<compile_context>
chip_gen: v7x
topology: tpu7x:2x2x1
jax: 0.10.0
libtpu: 0.0.40
codegen_flags: <defaults>
</compile_context>

<pallas_src>
import functools

import jax
import jax.numpy as jnp
from jax.experimental import pallas as pl
from jax.experimental.pallas import tpu as pltpu

IGNORE_INDEX = 5555


def _round_up(x, m):
    return (x + m - 1) // m * m


def prepare_oim_weight(lut, cq):
    """Concat LUT + CQ and pre-transpose to (F, C).

    Call once per parameter update and reuse across forward calls: this hoists
    the HBM->HBM copy of the whole table and the transpose out of the per-step
    hot path.
    """
    return jnp.concatenate([lut, cq], axis=0).T.astype(jnp.float32)


def _oim_kernel(x_ref, w_ref, t_ref, logits_ref, wnll_ref, wsum_ref,
                m_sc, l_sc, st_sc, *, scalar, num_classes, num_labeled, tile_c):
    # x: (tn, F) f32   w: (F, tc) f32 (pre-transposed)   t: (tn, 1) int32
    j = pl.program_id(1)

    @pl.when(j == 0)
    def _():
        m_sc[...] = jnp.full_like(m_sc, -jnp.inf)
        l_sc[...] = jnp.zeros_like(l_sc)
        st_sc[...] = jnp.zeros_like(st_sc)

    # Fold the scalar into the (tn, F) activations (cheaper than scaling the
    # (tn, tc) result), then drive the MXU: (tn, F) @ (F, tc) -> (tn, tc).
    x = x_ref[...] * scalar
    s = jnp.dot(x, w_ref[...], preferred_element_type=jnp.float32)
    logits_ref[...] = s                            # lane-dense store, C on lanes

    tn, tc = s.shape
    cls = jax.lax.broadcasted_iota(jnp.int32, (tn, tc), 1) + j * tile_c
    valid_cls = cls < num_classes                  # mask class-padding columns
    s_m = jnp.where(valid_cls, s, -jnp.inf)

    t = t_ref[...]                                 # (tn, 1)
    hit = (cls == t) & valid_cls                   # at most one hit per row overall
    st_sc[...] += jnp.sum(jnp.where(hit, s, 0.0), axis=-1, keepdims=True)

    # Flash-style streaming log-sum-exp over the class axis.
    m_prev = m_sc[...]
    m_new = jnp.maximum(m_prev, jnp.max(s_m, axis=-1, keepdims=True))
    l_sc[...] = (jnp.exp(m_prev - m_new) * l_sc[...]
                 + jnp.sum(jnp.exp(s_m - m_new), axis=-1, keepdims=True))
    m_sc[...] = m_new

    @pl.when(j == pl.num_programs(1) - 1)
    def _():
        lse = m_sc[...] + jnp.log(l_sc[...])       # (tn, 1)
        logp_t = st_sc[...] - lse                  # log-softmax at target class
        # class weight = 1 for labeled classes [0, L), 0 for CQ / ignored rows
        w_per = ((t >= 0) & (t < num_labeled)).astype(jnp.float32)
        wnll_ref[...] = -w_per * logp_t
        wsum_ref[...] = w_per


def oim_loss_forward(inputs, targets, w_fc, num_labeled, scalar=10.0,
                     *, tile_n=128, tile_c=512):
    """Returns (loss, scaled_logits) exactly like OIMLoss.forward.

    `w_fc` is the (F, C) table from `prepare_oim_weight(lut, cq)`.
    """
    inputs = inputs.astype(jnp.float32)
    targets = jnp.where(targets < 0, IGNORE_INDEX, targets).astype(jnp.int32)

    N, F = inputs.shape
    F_w, C = w_fc.shape
    assert F_w == F

    tile_n = min(tile_n, _round_up(N, 8))
    tile_c = min(tile_c, _round_up(C, 128))
    n_pad = _round_up(N, tile_n)
    c_pad = _round_up(C, tile_c)

    if n_pad != N:
        inputs = jnp.pad(inputs, ((0, n_pad - N), (0, 0)))
        targets = jnp.pad(targets, (0, n_pad - N), constant_values=IGNORE_INDEX)
    if c_pad != C:
        w_fc = jnp.pad(w_fc, ((0, 0), (0, c_pad - C)))

    grid = (n_pad // tile_n, c_pad // tile_c)

    # Double-buffered working set (x, w, logits, targets, per-row outs) +
    # scratch; keep comfortably inside scoped VMEM on v5e/v6e/v7x.
    io_bytes = 4 * (tile_n * F + F * tile_c + tile_n * tile_c + 3 * tile_n)
    vmem_limit = int(min(100 << 20, max(32 << 20, 2 * io_bytes + 3 * tile_n * 4)))

    kernel = functools.partial(
        _oim_kernel, scalar=float(scalar), num_classes=int(C),
        num_labeled=int(num_labeled), tile_c=int(tile_c))

    cost = pl.CostEstimate(
        flops=2 * n_pad * F * c_pad + 6 * n_pad * c_pad,
        transcendentals=n_pad * c_pad,
        bytes_accessed=4 * (n_pad * F + grid[0] * F * c_pad
                            + n_pad * c_pad + 3 * n_pad),
    )

    logits, wnll, wsum = pl.pallas_call(
        kernel,
        out_shape=(
            jax.ShapeDtypeStruct((n_pad, c_pad), jnp.float32),
            jax.ShapeDtypeStruct((n_pad, 1), jnp.float32),
            jax.ShapeDtypeStruct((n_pad, 1), jnp.float32),
        ),
        grid_spec=pltpu.PrefetchScalarGridSpec(
            num_scalar_prefetch=0,
            grid=grid,
            in_specs=[
                pl.BlockSpec((tile_n, F), lambda i, j: (i, 0)),
                pl.BlockSpec((F, tile_c), lambda i, j: (0, j)),
                pl.BlockSpec((tile_n, 1), lambda i, j: (i, 0)),
            ],
            out_specs=(
                pl.BlockSpec((tile_n, tile_c), lambda i, j: (i, j)),
                pl.BlockSpec((tile_n, 1), lambda i, j: (i, 0)),
                pl.BlockSpec((tile_n, 1), lambda i, j: (i, 0)),
            ),
            scratch_shapes=[
                pltpu.VMEM((tile_n, 1), jnp.float32),   # running max m
                pltpu.VMEM((tile_n, 1), jnp.float32),   # running sum l
                pltpu.VMEM((tile_n, 1), jnp.float32),   # target logit
            ],
        ),
        compiler_params=pltpu.CompilerParams(
            dimension_semantics=("parallel", "arbitrary"),
            vmem_limit_bytes=vmem_limit,
        ),
        cost_estimate=cost,
    )(inputs, w_fc, targets[:, None])

    loss = jnp.sum(wnll) / jnp.sum(wsum)    # padded / ignored rows contribute 0 / 0
    return loss, logits[:N, :C]


def _reference(inputs, targets, lut, cq, scalar=10.0):
    """Pure-JAX reference mirroring PyTorch F.cross_entropy semantics."""
    targets = jnp.where(targets < 0, IGNORE_INDEX, targets).astype(jnp.int32)
    w = jnp.concatenate([lut, cq], axis=0)
    logits = inputs @ w.T * scalar
    L, Q = lut.shape[0], cq.shape[0]
    cw = jnp.concatenate([jnp.ones((L,)), jnp.zeros((Q,))])
    logp = jax.nn.log_softmax(logits, axis=-1)
    valid = targets != IGNORE_INDEX
    t_safe = jnp.where(valid, targets, 0)
    per_w = jnp.where(valid, cw[t_safe], 0.0)
    per_nll = jnp.where(
        valid, -jnp.take_along_axis(logp, t_safe[:, None], axis=1)[:, 0], 0.0)
    loss = jnp.sum(per_w * per_nll) / jnp.sum(per_w)
    return loss, logits


if __name__ == "__main__":
    key = jax.random.PRNGKey(0)
    N, F, L, Q = 16, 32, 16, 240   # batch, num_features, num_labeled_pids, cq_size

    k1, k2, k3 = jax.random.split(key, 3)
    # Deterministic synthetic buffers (module registers zeros; use unit-norm
    # random rows so the loss is non-trivial).
    lut = jax.random.normal(k1, (L, F), jnp.float32)
    lut = lut / jnp.linalg.norm(lut, axis=1, keepdims=True)
    cq = jax.random.normal(k2, (Q, F), jnp.float32)
    cq = cq / jnp.linalg.norm(cq, axis=1, keepdims=True)
    inputs = jax.random.normal(k3, (N, F), jnp.float32)
    inputs = inputs / jnp.linalg.norm(inputs, axis=1, keepdims=True)

    # Mix of labeled ids [0, L), unlabeled (-1 -> ignore), and cq ids (>= L, weight 0).
    targets = jnp.array([0, 3, 5, -1, 7, 20, -1, 15,
                         2, 100, 9, -1, 11, 200, 4, 1], dtype=jnp.int32)

    # Weight table is prepared once and reused across steps.
    w_fc = prepare_oim_weight(lut, cq)

    # Small tiles so the demo exercises both grid axes and the streaming LSE.
    loss, logits = oim_loss_forward(inputs, targets, w_fc, L, scalar=10.0,
                                    tile_n=8, tile_c=128)
    jax.block_until_ready((loss, logits))

    ref_loss, ref_logits = _reference(inputs, targets, lut, cq, scalar=10.0)
    assert jnp.allclose(logits, ref_logits, atol=1e-4, rtol=1e-4)
    assert jnp.allclose(loss, ref_loss, atol=1e-4, rtol=1e-4)

    print("KERNEL_OK")
</pallas_src>

<mosaic_0001>
module attributes {stable_mosaic.version = 11 : i64} {
  func.func @_oim_kernel(%arg0: i32, %arg1: i32, %arg2: memref<8x32xf32, #tpu.memory_space<vmem>>, %arg3: memref<32x128xf32, #tpu.memory_space<vmem>>, %arg4: memref<8x1xi32, #tpu.memory_space<vmem>>, %arg5: memref<8x128xf32, #tpu.memory_space<vmem>>, %arg6: memref<8x1xf32, #tpu.memory_space<vmem>>, %arg7: memref<8x1xf32, #tpu.memory_space<vmem>>, %arg8: memref<8x1xf32, #tpu.memory_space<vmem>>, %arg9: memref<8x1xf32, #tpu.memory_space<vmem>>, %arg10: memref<8x1xf32, #tpu.memory_space<vmem>>) attributes {dimension_semantics = [#tpu.dimension_semantics<parallel>, #tpu.dimension_semantics<arbitrary>], iteration_bounds = array<i64: 2, 2>, scalar_prefetch = 0 : i64, scratch_operands = 3 : i64, tpu.core_type = #tpu.core_type<tc>, window_params = [{transform_indices = @transform_0, window_bounds = array<i64: 8, 32>}, {transform_indices = @transform_1, window_bounds = array<i64: 32, 128>}, {transform_indices = @transform_2, window_bounds = array<i64: 8, 1>}, {transform_indices = @transform_3, window_bounds = array<i64: 8, 128>}, {transform_indices = @transform_4, window_bounds = array<i64: 8, 1>}, {transform_indices = @transform_5, window_bounds = array<i64: 8, 1>}]} {
    %c0_i32 = arith.constant 0 : i32
    %0 = arith.cmpi eq, %arg1, %c0_i32 : i32
    %1 = arith.extui %0 : i1 to i32
    %c0_i32_0 = arith.constant 0 : i32
    %2 = arith.cmpi ne, %1, %c0_i32_0 : i32
    scf.if %2 {
      %cst_27 = arith.constant 0xFF800000 : f32
      %47 = vector.broadcast %cst_27 : f32 to vector<8x1xf32>
      %c0_28 = arith.constant 0 : index
      %c0_29 = arith.constant 0 : index
      %48 = vector.load %arg8[%c0_28, %c0_29] : memref<8x1xf32, #tpu.memory_space<vmem>>, vector<8x1xf32>
      tpu.vector_store %arg8[%c0_28, %c0_29], %47 {strides = array<i32>} : memref<8x1xf32, #tpu.memory_space<vmem>>, vector<8x1xf32>,
      %cst_30 = arith.constant 0.000000e+00 : f32
      %49 = vector.broadcast %cst_30 : f32 to vector<8x1xf32>
      %c0_31 = arith.constant 0 : index
      %c0_32 = arith.constant 0 : index
      %50 = vector.load %arg9[%c0_31, %c0_32] : memref<8x1xf32, #tpu.memory_space<vmem>>, vector<8x1xf32>
      tpu.vector_store %arg9[%c0_31, %c0_32], %49 {strides = array<i32>} : memref<8x1xf32, #tpu.memory_space<vmem>>, vector<8x1xf32>,
      %cst_33 = arith.constant 0.000000e+00 : f32
      %51 = vector.broadcast %cst_33 : f32 to vector<8x1xf32>
      %c0_34 = arith.constant 0 : index
      %c0_35 = arith.constant 0 : index
      %52 = vector.load %arg10[%c0_34, %c0_35] : memref<8x1xf32, #tpu.memory_space<vmem>>, vector<8x1xf32>
      tpu.vector_store %arg10[%c0_34, %c0_35], %51 {strides = array<i32>} : memref<8x1xf32, #tpu.memory_space<vmem>>, vector<8x1xf32>,
    } else {
    }
    %c0 = arith.constant 0 : index
    %c0_1 = arith.constant 0 : index
    %3 = vector.load %arg2[%c0, %c0_1] : memref<8x32xf32, #tpu.memory_space<vmem>>, vector<8x32xf32>
    %cst = arith.constant 1.000000e+01 : f32
    %4 = vector.broadcast %cst : f32 to vector<8x32xf32>
    %5 = arith.mulf %3, %4 : vector<8x32xf32>
    %c0_2 = arith.constant 0 : index
    %c0_3 = arith.constant 0 : index
    %6 = vector.load %arg3[%c0_2, %c0_3] : memref<32x128xf32, #tpu.memory_space<vmem>>, vector<32x128xf32>
    %cst_4 = arith.constant dense<0.000000e+00> : vector<8x128xf32>
    %7 = tpu.matmul %5, %6, %cst_4 {dimension_numbers = #tpu.dot_dimension_numbers<[1], [0], [0], [1], [0, 0, 1, 1], [], []>} : vector<8x32xf32>, vector<32x128xf32>, vector<8x128xf32> -> vector<8x128xf32>
    %c0_5 = arith.constant 0 : index
    %c0_6 = arith.constant 0 : index
    %8 = vector.load %arg5[%c0_5, %c0_6] : memref<8x128xf32, #tpu.memory_space<vmem>>, vector<8x128xf32>
    tpu.vector_store %arg5[%c0_5, %c0_6], %7 {strides = array<i32>} : memref<8x128xf32, #tpu.memory_space<vmem>>, vector<8x128xf32>,
    %9 = tpu.iota {dimensions = array<i32: 1>} : vector<8x128xi32>
    %c128_i32 = arith.constant 128 : i32
    %10 = arith.muli %arg1, %c128_i32 : i32
    %11 = vector.broadcast %10 : i32 to vector<8x128xi32>
    %12 = arith.addi %9, %11 : vector<8x128xi32>
    %c256_i32 = arith.constant 256 : i32
    %13 = vector.broadcast %c256_i32 : i32 to vector<8x128xi32>
    %14 = arith.cmpi slt, %12, %13 : vector<8x128xi32>
    %cst_7 = arith.constant 0xFF800000 : f32
    %15 = vector.broadcast %cst_7 : f32 to vector<8x128xf32>
    %16 = arith.select %14, %7, %15 : vector<8x128xi1>, vector<8x128xf32>
    %c0_8 = arith.constant 0 : index
    %c0_9 = arith.constant 0 : index
    %17 = vector.load %arg4[%c0_8, %c0_9] : memref<8x1xi32, #tpu.memory_space<vmem>>, vector<8x1xi32>
    %18 = vector.broadcast %17 : vector<8x1xi32> to vector<8x128xi32>
    %19 = arith.cmpi eq, %12, %18 : vector<8x128xi32>
    %20 = arith.andi %19, %14 : vector<8x128xi1>
    %c0_10 = arith.constant 0 : index
    %c0_11 = arith.constant 0 : index
    %21 = vector.load %arg10[%c0_10, %c0_11] : memref<8x1xf32, #tpu.memory_space<vmem>>, vector<8x1xf32>
    %cst_12 = arith.constant 0.000000e+00 : f32
    %22 = vector.broadcast %cst_12 : f32 to vector<8x128xf32>
    %23 = arith.select %20, %7, %22 : vector<8x128xi1>, vector<8x128xf32>
    %cst_13 = arith.constant dense<0.000000e+00> : vector<8xf32>
    %24 = vector.multi_reduction <add>, %23, %cst_13 [1] : vector<8x128xf32> to vector<8xf32>
    %25 = vector.shape_cast %24 : vector<8xf32> to vector<8x1xf32>
    %26 = arith.addf %21, %25 : vector<8x1xf32>
    %c0_14 = arith.constant 0 : index
    %c0_15 = arith.constant 0 : index
    %27 = vector.load %arg10[%c0_14, %c0_15] : memref<8x1xf32, #tpu.memory_space<vmem>>, vector<8x1xf32>
    tpu.vector_store %arg10[%c0_14, %c0_15], %26 {strides = array<i32>} : memref<8x1xf32, #tpu.memory_space<vmem>>, vector<8x1xf32>,
    %c0_16 = arith.constant 0 : index
    %c0_17 = arith.constant 0 : index
    %28 = vector.load %arg8[%c0_16, %c0_17] : memref<8x1xf32, #tpu.memory_space<vmem>>, vector<8x1xf32>
    %cst_18 = arith.constant dense<0xFF800000> : vector<8xf32>
    %29 = vector.multi_reduction <maximumf>, %16, %cst_18 [1] : vector<8x128xf32> to vector<8xf32>
    %30 = vector.shape_cast %29 : vector<8xf32> to vector<8x1xf32>
    %31 = arith.maximumf %28, %30 : vector<8x1xf32>
    %32 = arith.subf %28, %31 : vector<8x1xf32>
    %33 = math.exp %32 : vector<8x1xf32>
    %c0_19 = arith.constant 0 : index
    %c0_20 = arith.constant 0 : index
    %34 = vector.load %arg9[%c0_19, %c0_20] : memref<8x1xf32, #tpu.memory_space<vmem>>, vector<8x1xf32>
    %35 = arith.mulf %33, %34 : vector<8x1xf32>
    %36 = vector.broadcast %31 : vector<8x1xf32> to vector<8x128xf32>
    %37 = arith.subf %16, %36 : vector<8x128xf32>
    %38 = math.exp %37 : vector<8x128xf32>
    %cst_21 = arith.constant dense<0.000000e+00> : vector<8xf32>
    %39 = vector.multi_reduction <add>, %38, %cst_21 [1] : vector<8x128xf32> to vector<8xf32>
    %40 = vector.shape_cast %39 : vector<8xf32> to vector<8x1xf32>
    %41 = arith.addf %35, %40 : vector<8x1xf32>
    %c0_22 = arith.constant 0 : index
    %c0_23 = arith.constant 0 : index
    %42 = vector.load %arg9[%c0_22, %c0_23] : memref<8x1xf32, #tpu.memory_space<vmem>>, vector<8x1xf32>
    tpu.vector_store %arg9[%c0_22, %c0_23], %41 {strides = array<i32>} : memref<8x1xf32, #tpu.memory_space<vmem>>, vector<8x1xf32>,
    %c0_24 = arith.constant 0 : index
    %c0_25 = arith.constant 0 : index
    %43 = vector.load %arg8[%c0_24, %c0_25] : memref<8x1xf32, #tpu.memory_space<vmem>>, vector<8x1xf32>
    tpu.vector_store %arg8[%c0_24, %c0_25], %31 {strides = array<i32>} : memref<8x1xf32, #tpu.memory_space<vmem>>, vector<8x1xf32>,
    %c1_i32 = arith.constant 1 : i32
    %44 = arith.cmpi eq, %arg1, %c1_i32 : i32
    %45 = arith.extui %44 : i1 to i32
    %c0_i32_26 = arith.constant 0 : i32
    %46 = arith.cmpi ne, %45, %c0_i32_26 : i32
    scf.if %46 {
      %c0_27 = arith.constant 0 : index
      %c0_28 = arith.constant 0 : index
      %47 = vector.load %arg8[%c0_27, %c0_28] : memref<8x1xf32, #tpu.memory_space<vmem>>, vector<8x1xf32>
      %c0_29 = arith.constant 0 : index
      %c0_30 = arith.constant 0 : index
      %48 = vector.load %arg9[%c0_29, %c0_30] : memref<8x1xf32, #tpu.memory_space<vmem>>, vector<8x1xf32>
      %49 = math.log %48 : vector<8x1xf32>
      %50 = arith.addf %47, %49 : vector<8x1xf32>
      %c0_31 = arith.constant 0 : index
      %c0_32 = arith.constant 0 : index
      %51 = vector.load %arg10[%c0_31, %c0_32] : memref<8x1xf32, #tpu.memory_space<vmem>>, vector<8x1xf32>
      %52 = arith.subf %51, %50 : vector<8x1xf32>
      %c0_i32_33 = arith.constant 0 : i32
      %53 = vector.broadcast %c0_i32_33 : i32 to vector<8x1xi32>
      %54 = arith.cmpi sge, %17, %53 : vector<8x1xi32>
      %c16_i32 = arith.constant 16 : i32
      %55 = vector.broadcast %c16_i32 : i32 to vector<8x1xi32>
      %56 = arith.cmpi slt, %17, %55 : vector<8x1xi32>
      %57 = arith.andi %54, %56 : vector<8x1xi1>
      %58 = arith.extui %57 : vector<8x1xi1> to vector<8x1xi32>
      %59 = arith.sitofp %58 : vector<8x1xi32> to vector<8x1xf32>
      %cst_34 = arith.constant 0.000000e+00 : f32
      %60 = vector.broadcast %cst_34 : f32 to vector<8x1xf32>
      %61 = arith.subf %60, %59 : vector<8x1xf32>
      %62 = arith.mulf %61, %52 : vector<8x1xf32>
      %c0_35 = arith.constant 0 : index
      %c0_36 = arith.constant 0 : index
      %63 = vector.load %arg6[%c0_35, %c0_36] : memref<8x1xf32, #tpu.memory_space<vmem>>, vector<8x1xf32>
      tpu.vector_store %arg6[%c0_35, %c0_36], %62 {strides = array<i32>} : memref<8x1xf32, #tpu.memory_space<vmem>>, vector<8x1xf32>,
      %c0_37 = arith.constant 0 : index
      %c0_38 = arith.constant 0 : index
      %64 = vector.load %arg7[%c0_37, %c0_38] : memref<8x1xf32, #tpu.memory_space<vmem>>, vector<8x1xf32>
      tpu.vector_store %arg7[%c0_37, %c0_38], %59 {strides = array<i32>} : memref<8x1xf32, #tpu.memory_space<vmem>>, vector<8x1xf32>,
    } else {
    }
    return
  }
  func.func @transform_0(%arg0: i32, %arg1: i32) -> (i32, i32) {
    %c0_i32 = arith.constant 0 : i32
    %c0_i32_0 = arith.constant 0 : i32
    return %arg0, %c0_i32 : i32, i32
  }
  func.func @transform_1(%arg0: i32, %arg1: i32) -> (i32, i32) {
    %c0_i32 = arith.constant 0 : i32
    %c0_i32_0 = arith.constant 0 : i32
    return %c0_i32, %arg1 : i32, i32
  }
  func.func @transform_2(%arg0: i32, %arg1: i32) -> (i32, i32) {
    %c0_i32 = arith.constant 0 : i32
    %c0_i32_0 = arith.constant 0 : i32
    return %arg0, %c0_i32 : i32, i32
  }
  func.func @transform_3(%arg0: i32, %arg1: i32) -> (i32, i32) {
    %c0_i32 = arith.constant 0 : i32
    return %arg0, %arg1 : i32, i32
  }
  func.func @transform_4(%arg0: i32, %arg1: i32) -> (i32, i32) {
    %c0_i32 = arith.constant 0 : i32
    %c0_i32_0 = arith.constant 0 : i32
    return %arg0, %c0_i32 : i32, i32
  }
  func.func @transform_5(%arg0: i32, %arg1: i32) -> (i32, i32) {
    %c0_i32 = arith.constant 0 : i32
    %c0_i32_0 = arith.constant 0 : i32
    return %arg0, %c0_i32 : i32, i32
  }
}

</mosaic_0001>

<llo_original>
// kernel: tpu_custom_call.1
$region0: #{tpu_custom_call.1}
  #allocation0 [shape = 'u32[]', space=smem, size = 0x4, offset = 0x4, fixed_abs, tag = 'smem constant byte address 0x4 - core index']
  #allocation1 [shape = 'u32[144,128]{1,0:T(1,128)}', space=vmem, size = 0x12000, scoped, tag = 'internal scratch']
  #allocation2 [shape = 'f32[8,1]{1,0:T(8,128)}', space=vmem, size = 0x1000, scoped, tag = 'scratch operand']
  #allocation3 [shape = 'f32[8,1]{1,0:T(8,128)}', space=vmem, size = 0x1000, scoped, tag = 'scratch operand']
  #allocation4 [shape = 'f32[8,1]{1,0:T(8,128)}', space=vmem, size = 0x1000, scoped, tag = 'scratch operand']
  %s0 = inlined_call_operand.vmem [shape: f32[16,32], index: 0, kind: input, shape index: {}]
  %s1 = inlined_call_operand.hbm [shape: f32[32,256], index: 1, kind: input, shape index: {}]
  %s2 = inlined_call_operand.vmem [shape: s32[16,1], index: 2, kind: input, shape index: {}]
  %s3 = inlined_call_operand.hbm [shape: f32[16,256], index: 3, kind: output, shape index: {0}]
  %s4 = inlined_call_operand.vmem [shape: f32[16,1], index: 4, kind: output, shape index: {1}]
  %s5 = inlined_call_operand.vmem [shape: f32[16,1], index: 5, kind: output, shape index: {2}]
  %6 = xla_tuple %s3, %s4, %s5
  %s7 = sld [smem:[#allocation0]]
  $region73: #{tpu_custom_call.1} parent=0
    _
  %s9 = ssub.s32 1, %s7
  %s10 = scalar_select 0, %s9, %s7
  $region1: #{tpu_custom_call.1} parent=0
    #allocation5 [shape = 'u8[32768]{0}', space=vmem, size = 0x8000, scoped, tag = 'input window, operand 1']
    #allocation6 [shape = 's32[2]{0}', space=sflag, size = 0x8, scoped, tag = 'scoped memory for tpu_custom_call.1']
    #allocation7 [shape = 's32[2]{0}', space=sflag, size = 0x8, scoped, tag = 'scoped memory for tpu_custom_call.1']
    #allocation8 [shape = 'u8[8192]{0}', space=vmem, size = 0x2000, scoped, tag = 'output window, operand 0']
    %11 = vsyncpa [#allocation6], 0
    %s12 = scalar_lea.sflag [#allocation6], 1
    %13 = vsyncpa %s12, 0
    %14 = vsyncpa [#allocation7], 0
    %s15 = scalar_lea.sflag [#allocation7], 1
    %16 = vsyncpa %s15, 0
    loop: start=0, step=1, limit=6
    $region2: #{tpu_custom_call.1} parent=1 // loop_pre_header
      _
    $region3: #{tpu_custom_call.1} parent=1 // loop_header
      %s18 = sphi 0, %s22
      %p19 = scmp.ge.s32.totalorder %s18, 6
      %s25 = sphi 0, %s37
      %s26 = sphi 0, %s33
      %s27 = sphi 0, %s25
      %s28 = sphi 0, %s26
      %s29 = sphi 0, %s27
      %s30 = sphi 0, %s28
      %s40 = sphi 0, %s42
      %s43 = sphi 0, %s40
      %s44 = sphi 0, %s43
      %s60 = sphi 0, %s44
      %s66 = sphi 0, %s68
      %s69 = sphi 0, %s66
      %s70 = sphi 0, %s69
      %s86 = sphi 0, %s70
      %s92 = sphi 0, %s94
      %s95 = sphi 0, %s92
      %s96 = sphi 0, %s95
      %s112 = sphi 0, %s96
      %s120 = sphi 0, %s122
      %s123 = sphi 0, %s120
      %s124 = sphi 0, %s123
      %s140 = sphi 0, %s124
      %s146 = sphi 0, %s148
      %s149 = sphi 0, %s146
      %s150 = sphi 0, %s149
      %s166 = sphi 0, %s150
      %s172 = sphi 0, %s174
      %s175 = sphi 0, %s172
      %s176 = sphi 0, %s175
      %s192 = sphi 0, %s176
    $region4: #{tpu_custom_call.1} parent=1 // loop_header_branch
      %21 = sbr.rel (%p19) target = $region8
    $region5: #{tpu_custom_call.1} parent=1 // loop_body
      %s23 = ssub.s32 %s18, 1
      %s24 = ssub.s32 %s18, 2
      %s31 = sadd.s32 1, %s26
      %p32 = scmp.ge.s32.totalorder %s31, 2
      %s33 = scalar_select %p32, 0, %s31
      %s34 = sadd.s32 1, %s25
      %s35 = scalar_select %p32, %s34, %s25
      %p36 = scmp.ge.s32.totalorder %s35, 2
      %s37 = scalar_select %p36, 0, %s35
      %s38 = ssub.s32 %s25, %s37
      %p39 = scmp.eq.s32.totalorder %s38, 0
      %s41 = sadd.s32 %s40, 1
      %s42 = scalar_select %p39, %s40, %s41
      %p45 = pneg %p39
      %p46 = scmp.eq.s32.totalorder %s18, 3
      %p47 = por %p45, %p46
      %p48 = scmp.ne.s32.totalorder %s40, %s43
      %p49 = scmp.eq.s32.totalorder %s18, 0
      %p50 = por %p48, %p49
      %p51 = scmp.ne.s32.totalorder %s40, %s43
      %p52 = scmp.eq.s32.totalorder %s23, 3
      %p53 = por %p51, %p52
      %p54 = scmp.ne.s32.totalorder %s43, %s44
      %p55 = scmp.eq.s32.totalorder %s23, 0
      %p56 = por %p54, %p55
      %p57 = scmp.ne.s32.totalorder %s43, %s44
      %p58 = scmp.eq.s32.totalorder %s24, 3
      %p59 = por %p57, %p58
      %p61 = scmp.ne.s32.totalorder %s44, %s60
      %p62 = scmp.eq.s32.totalorder %s24, 0
      %p63 = por %p61, %p62
      %s64 = ssub.s32 %s26, %s33
      %p65 = scmp.eq.s32.totalorder %s64, 0
      %s67 = sadd.s32 %s66, 1
      %s68 = scalar_select %p65, %s66, %s67
      %p71 = pneg %p65
      %p72 = scmp.eq.s32.totalorder %s18, 3
      %p73 = por %p71, %p72
      %p74 = scmp.ne.s32.totalorder %s66, %s69
      %p75 = scmp.eq.s32.totalorder %s18, 0
      %p76 = por %p74, %p75
      %p77 = scmp.ne.s32.totalorder %s66, %s69
      %p78 = scmp.eq.s32.totalorder %s23, 3
      %p79 = por %p77, %p78
      %p80 = scmp.ne.s32.totalorder %s69, %s70
      %p81 = scmp.eq.s32.totalorder %s23, 0
      %p82 = por %p80, %p81
      %p83 = scmp.ne.s32.totalorder %s69, %s70
      %p84 = scmp.eq.s32.totalorder %s24, 3
      %p85 = por %p83, %p84
      %p87 = scmp.ne.s32.totalorder %s70, %s86
      %p88 = scmp.eq.s32.totalorder %s24, 0
      %p89 = por %p87, %p88
      %s90 = ssub.s32 %s25, %s37
      %p91 = scmp.eq.s32.totalorder %s90, 0
      %s93 = sadd.s32 %s92, 1
      %s94 = scalar_select %p91, %s92, %s93
      %p97 = pneg %p91
      %p98 = scmp.eq.s32.totalorder %s18, 3
      %p99 = por %p97, %p98
      %p100 = scmp.ne.s32.totalorder %s92, %s95
      %p101 = scmp.eq.s32.totalorder %s18, 0
      %p102 = por %p100, %p101
      %p103 = scmp.ne.s32.totalorder %s92, %s95
      %p104 = scmp.eq.s32.totalorder %s23, 3
      %p105 = por %p103, %p104
      %p106 = scmp.ne.s32.totalorder %s95, %s96
      %p107 = scmp.eq.s32.totalorder %s23, 0
      %p108 = por %p106, %p107
      %p109 = scmp.ne.s32.totalorder %s95, %s96
      %p110 = scmp.eq.s32.totalorder %s24, 3
      %p111 = por %p109, %p110
      %p113 = scmp.ne.s32.totalorder %s96, %s112
      %p114 = scmp.eq.s32.totalorder %s24, 0
      %p115 = por %p113, %p114
      %s116 = ssub.s32 %s25, %s37
      %s117 = ssub.s32 %s26, %s33
      %s118 = sor.u32 %s116, %s117
      %p119 = scmp.eq.s32.totalorder %s118, 0
      %s121 = sadd.s32 %s120, 1
      %s122 = scalar_select %p119, %s120, %s121
      %p125 = pneg %p119
      %p126 = scmp.eq.s32.totalorder %s18, 3
      %p127 = por %p125, %p126
      %p128 = scmp.ne.s32.totalorder %s120, %s123
      %p129 = scmp.eq.s32.totalorder %s18, 0
      %p130 = por %p128, %p129
      %p131 = scmp.ne.s32.totalorder %s120, %s123
      %p132 = scmp.eq.s32.totalorder %s23, 3
      %p133 = por %p131, %p132
      %p134 = scmp.ne.s32.totalorder %s123, %s124
      %p135 = scmp.eq.s32.totalorder %s23, 0
      %p136 = por %p134, %p135
      %p137 = scmp.ne.s32.totalorder %s123, %s124
      %p138 = scmp.eq.s32.totalorder %s24, 3
      %p139 = por %p137, %p138
      %p141 = scmp.ne.s32.totalorder %s124, %s140
      %p142 = scmp.eq.s32.totalorder %s24, 0
      %p143 = por %p141, %p142
      %s144 = ssub.s32 %s25, %s37
      %p145 = scmp.eq.s32.totalorder %s144, 0
      %s147 = sadd.s32 %s146, 1
      %s148 = scalar_select %p145, %s146, %s147
      %p151 = pneg %p145
      %p152 = scmp.eq.s32.totalorder %s18, 3
      %p153 = por %p151, %p152
      %p154 = scmp.ne.s32.totalorder %s146, %s149
      %p155 = scmp.eq.s32.totalorder %s18, 0
      %p156 = por %p154, %p155
      %p157 = scmp.ne.s32.totalorder %s146, %s149
      %p158 = scmp.eq.s32.totalorder %s23, 3
      %p159 = por %p157, %p158
      %p160 = scmp.ne.s32.totalorder %s149, %s150
      %p161 = scmp.eq.s32.totalorder %s23, 0
      %p162 = por %p160, %p161
      %p163 = scmp.ne.s32.totalorder %s149, %s150
      %p164 = scmp.eq.s32.totalorder %s24, 3
      %p165 = por %p163, %p164
      %p167 = scmp.ne.s32.totalorder %s150, %s166
      %p168 = scmp.eq.s32.totalorder %s24, 0
      %p169 = por %p167, %p168
      %s170 = ssub.s32 %s25, %s37
      %p171 = scmp.eq.s32.totalorder %s170, 0
      %s173 = sadd.s32 %s172, 1
      %s174 = scalar_select %p171, %s172, %s173
      %p177 = pneg %p171
      %p178 = scmp.eq.s32.totalorder %s18, 3
      %p179 = por %p177, %p178
      %p180 = scmp.ne.s32.totalorder %s172, %s175
      %p181 = scmp.eq.s32.totalorder %s18, 0
      %p182 = por %p180, %p181
      %p183 = scmp.ne.s32.totalorder %s172, %s175
      %p184 = scmp.eq.s32.totalorder %s23, 3
      %p185 = por %p183, %p184
      %p186 = scmp.ne.s32.totalorder %s175, %s176
      %p187 = scmp.eq.s32.totalorder %s23, 0
      %p188 = por %p186, %p187
      %p189 = scmp.ne.s32.totalorder %s175, %s176
      %p190 = scmp.eq.s32.totalorder %s24, 3
      %p191 = por %p189, %p190
      %p193 = scmp.ne.s32.totalorder %s176, %s192
      %p194 = scmp.eq.s32.totalorder %s24, 0
      %p195 = por %p193, %p194
      %p196 = scmp.le.s32.totalorder 1, %s18
      %p197 = scmp.lt.s32.totalorder %s18, 5
      %p198 = pnand %p196, %p197
      %p199 = pneg %p198
      // Predicated region
      $region9: #{tpu_custom_call.1} parent=5 // pred_check
        _
      $region10: #{tpu_custom_call.1} parent=5 // pred_check_branch
        %201 = sbr.rel (%p198) target = $region12
      $region11: #{tpu_custom_call.1} parent=5 // pred_region
        %s202 = ssub.s32 %s18, 1
      $region12: #{tpu_custom_call.1} parent=5 // pred_fallthru
        _
      %p203 = scmp.lt.s32.totalorder %s18, 4
      // Predicated region
      $region13: #{tpu_custom_call.1} parent=5 // pred_check
        %p204 = pneg %p203
      $region14: #{tpu_custom_call.1} parent=5 // pred_check_branch
        %206 = sbr.rel (%p204) target = $region16
      $region15: #{tpu_custom_call.1} parent=5 // pred_region
        // Predicated region
        $region17: #{tpu_custom_call.1} parent=15 // pred_check
          %p207 = pneg %p50
        $region18: #{tpu_custom_call.1} parent=15 // pred_check_branch
          %209 = sbr.rel (%p207) target = $region20
        $region19: #{tpu_custom_call.1} parent=15 // pred_region
          %p210 = scmp.lt.s32.totalorder %s25, 1
          %s211 = scalar_select %p210, %s25, 1
          %s212 = smul.addr %s211, 8
          %s213 = scalar_lea.vmem %s0, %s212
        $region20: #{tpu_custom_call.1} parent=15 // pred_fallthru
          _
        // Predicated region
        $region21: #{tpu_custom_call.1} parent=15 // pred_check
          %p214 = pneg %p76
        $region22: #{tpu_custom_call.1} parent=15 // pred_check_branch
          %216 = sbr.rel (%p214) target = $region24
        $region23: #{tpu_custom_call.1} parent=15 // pred_region
          %s217 = sand.u32 %s66, 1
          %s218 = scalar_lea.sflag [#allocation6], %s217
          %s219 = sand.u32 %s66, 1
          %s220 = smul.addr %s219, 32
          %s221 = scalar_lea.vmem [#allocation5], %s220
          %s223 = ssub.s32 512, 512
          %224 = vsyncadd %s218, %s223
          %s225 = smul.addr %s26, 128
          %s226 = scalar_lea.hbm %s1, %s225
          %s227 = sshll.u32 %s221, 4
          %s228 = int_to_ptr.vmem [resolvable:$true] %s227
          %233 = dma.hbm_to_vmem [thread:$0]  %s226, 512, %s228, %s218, 256, 128, 8
        $region24: #{tpu_custom_call.1} parent=15 // pred_fallthru
          _
        // Predicated region
        $region25: #{tpu_custom_call.1} parent=15 // pred_check
          %p234 = pneg %p102
        $region26: #{tpu_custom_call.1} parent=15 // pred_check_branch
          %236 = sbr.rel (%p234) target = $region28
        $region27: #{tpu_custom_call.1} parent=15 // pred_region
          %p237 = scmp.lt.s32.totalorder %s25, 1
          %s238 = scalar_select %p237, %s25, 1
          %s239 = smul.addr %s238, 8
          %s240 = scalar_lea.vmem %s2, %s239
        $region28: #{tpu_custom_call.1} parent=15 // pred_fallthru
          _
      $region16: #{tpu_custom_call.1} parent=5 // pred_fallthru
        _
      %p241 = scmp.le.s32.totalorder 1, %s18
      %p242 = scmp.lt.s32.totalorder %s18, 5
      %p243 = pnand %p241, %p242
      %p244 = pneg %p243
      // Predicated region
      $region29: #{tpu_custom_call.1} parent=5 // pred_check
        _
      $region30: #{tpu_custom_call.1} parent=5 // pred_check_branch
        %246 = sbr.rel (%p243) target = $region32
      $region31: #{tpu_custom_call.1} parent=5 // pred_region
        %s247 = ssub.s32 %s18, 1
        %s248 = sand.u32 %s69, 1
        %s249 = scalar_lea.sflag [#allocation6], %s248
        %s250 = sand.u32 %s69, 1
        %s251 = smul.addr %s250, 32
        %s252 = scalar_lea.vmem [#allocation5], %s251
        // Predicated region
        $region33: #{tpu_custom_call.1} parent=31 // pred_check
          %p253 = pneg %p82
        $region34: #{tpu_custom_call.1} parent=31 // pred_check_branch
          %255 = sbr.rel (%p253) target = $region36
        $region35: #{tpu_custom_call.1} parent=31 // pred_region
          %256 = dma.done %s249, 512
        $region36: #{tpu_custom_call.1} parent=31 // pred_fallthru
          _
        %p257 = scmp.lt.s32.totalorder %s27, 1
        %s258 = scalar_select %p257, %s27, 1
        %s259 = smul.addr %s258, 8
        %s260 = scalar_lea.vmem %s0, %s259
        %p261 = pneg %p56
        %p262 = pneg %p53
        %s263 = sand.u32 %s69, 1
        %s264 = scalar_lea.sflag [#allocation6], %s263
        %s265 = sand.u32 %s69, 1
        %s266 = smul.addr %s265, 32
        %s267 = scalar_lea.vmem [#allocation5], %s266
        %p268 = pneg %p82
        %p269 = pneg %p79
        %p270 = scmp.lt.s32.totalorder %s27, 1
        %s271 = scalar_select %p270, %s27, 1
        %s272 = smul.addr %s271, 8
        %s273 = scalar_lea.vmem %s2, %s272
        %p274 = pneg %p108
        %p275 = pneg %p105
        %p276 = pneg %p136
        %p277 = pneg %p133
        %s278 = sand.u32 %s123, 1
        %s279 = scalar_lea.sflag [#allocation7], %s278
        %s280 = sand.u32 %s123, 1
        %s281 = smul.addr %s280, 8
        %s282 = scalar_lea.vmem [#allocation8], %s281
        %p283 = pneg %p162
        %p284 = pneg %p159
        %p285 = scmp.lt.s32.totalorder %s27, 1
        %s286 = scalar_select %p285, %s27, 1
        %s287 = smul.addr %s286, 8
        %s288 = scalar_lea.vmem %s4, %s287
        %p289 = pneg %p188
        %p290 = pneg %p185
        %p291 = scmp.lt.s32.totalorder %s27, 1
        %s292 = scalar_select %p291, %s27, 1
        %s293 = smul.addr %s292, 8
        %s294 = scalar_lea.vmem %s5, %s293
        %p295 = scmp.lt.s32.totalorder %s27, 1
        %s296 = scalar_select %p295, %s27, 1
        %s297 = smul.addr %s296, 8
        %s298 = scalar_lea.vmem %s0, %s297
        %p299 = scmp.lt.s32.totalorder %s27, 1
        %s300 = scalar_select %p299, %s27, 1
        %s301 = smul.addr %s300, 8
        %s302 = scalar_lea.vmem %s2, %s301
        %p303 = scmp.lt.s32.totalorder %s27, 1
        %s304 = scalar_select %p303, %s27, 1
        %s305 = smul.addr %s304, 8
        %s306 = scalar_lea.vmem %s4, %s305
        %p307 = scmp.lt.s32.totalorder %s27, 1
        %s308 = scalar_select %p307, %s27, 1
        %s309 = smul.addr %s308, 8
        %s310 = scalar_lea.vmem %s5, %s309
        %p311 = scmp.eq.s32.totalorder %s28, 0
        // Predicated region
        $region37: #{tpu_custom_call.1} parent=31 // pred_check
          %p312 = pneg %p311
        $region38: #{tpu_custom_call.1} parent=31 // pred_check_branch
          %314 = sbr.rel (%p312) target = $region40
        $region39: #{tpu_custom_call.1} parent=31 // pred_region
          %vm315 = vcmask 7168
          %316 = vst.msk [vmem:[#allocation2] sm:$0xff] %vm315, -inf
          %317 = vst.msk [vmem:[#allocation3] sm:$0xff] %vm315, 0.0
          %318 = vst.msk [vmem:[#allocation4] sm:$0xff] %vm315, 0.0
        $region40: #{tpu_custom_call.1} parent=31 // pred_fallthru
          _
        %v319 = vld [vmem:[%s298] sm:$0xff]
        %v320 = vmul.f32 %v319, 10.0
        %v321 = vld [vmem:[%s252] sm:$0xff]
        %v322 = vld [vmem:[%s252 + $0x8] sm:$0xff]
        %v323 = vld [vmem:[%s252 + $0x10] sm:$0xff]
        %v324 = vld [vmem:[%s252 + $0x18] sm:$0xff]
        %vm325 = vcmask 261120
        %v327 = vsel %vm325, %v320, 0
        %329 = vmatprep.subr.mxu0 0.0
        %330 = vmatpush1.msra.mxu0 %v321
        %331 = vmatprep.subr.mxu0 0.0
        %332 = vmatpush1.msra.mxu0 %v322
        %333 = vmatprep.subr.mxu0 0.0
        %334 = vmatpush1.msra.mxu0 %v323
        %335 = vmatprep.subr.mxu0 0.0
        %336 = vmatpush1.msra.mxu0 %v324
        %337 = vmatprep.subr.mxu0 0.0
        %338 = vmatpush1.msra.mxu0 0.0
        %339 = vmatprep.subr.mxu0 0.0
        %340 = vmatpush1.msra.mxu0 0.0
        %341 = vmatprep.subr.mxu0 0.0
        %342 = vmatpush1.msra.mxu0 0.0
        %343 = vmatprep.subr.mxu0 0.0
        %344 = vmatpush1.msra.mxu0 0.0
        %345 = vmatprep.subr.mxu0 0.0
        %346 = vmatpush1.msra.mxu0 0.0
        %347 = vmatprep.subr.mxu0 0.0
        %348 = vmatpush1.msra.mxu0 0.0
        %349 = vmatprep.subr.mxu0 0.0
        %350 = vmatpush1.msra.mxu0 0.0
        %351 = vmatprep.subr.mxu0 0.0
        %352 = vmatpush1.msra.mxu0 0.0
        %353 = vmatprep.subr.mxu0 0.0
        %354 = vmatpush1.msra.mxu0 0.0
        %355 = vmatprep.subr.mxu0 0.0
        %356 = vmatpush1.msra.mxu0 0.0
        %357 = vmatprep.subr.mxu0 0.0
        %358 = vmatpush1.msra.mxu0 0.0
        %359 = vmatprep.subr.mxu0 0.0
        %360 = vmatpush1.msra.mxu0 0.0
        %361 = vmatprep.subr.mxu0 0.0
        %362 = vmatpush1.msra.mxu0 0.0
        %363 = vmatprep.subr.mxu0 0.0
        %364 = vmatpush1.msra.mxu0 0.0
        %365 = vmatprep.subr.mxu0 0.0
        %366 = vmatpush1.msra.mxu0 0.0
        %367 = vmatprep.subr.mxu0 0.0
        %368 = vmatpush1.msra.mxu0 0.0
        %369 = vmatprep.subr.mxu0 0.0
        %370 = vmatpush1.msra.mxu0 0.0
        %371 = vmatprep.subr.mxu0 0.0
        %372 = vmatpush1.msra.mxu0 0.0
        %373 = vmatprep.subr.mxu0 0.0
        %374 = vmatpush1.msra.mxu0 0.0
        %375 = vmatprep.subr.mxu0 0.0
        %376 = vmatpush1.msra.mxu0 0.0
        %377 = vmatprep.subr.mxu0 0.0
        %378 = vmatpush1.msra.mxu0 0.0
        %379 = vmatprep.subr.mxu0 0.0
        %380 = vmatpush1.msra.mxu0 0.0
        %381 = vmatprep.subr.mxu0 0.0
        %382 = vmatpush1.msra.mxu0 0.0
        %383 = vmatprep.subr.mxu0 0.0
        %384 = vmatpush1.msra.mxu0 0.0
        %385 = vmatprep.subr.mxu0 0.0
        %386 = vmatpush1.msra.mxu0 0.0
        %387 = vmatprep.subr.mxu0 0.0
        %388 = vmatpush1.msra.mxu0 0.0
        %389 = vmatprep.subr.mxu0 0.0
        %390 = vmatpush1.msra.mxu0 0.0
        %391 = vmatprep.subr.mxu0 0.0
        %392 = vmatpush1.msra.mxu0 0.0
        %393 = vmatprep.mubr.f32.mxu0 0.0
        %394 = vmatmul.mubr.f32.gmra.mrb[0].mxu0 %v327
        %v395 = vpop.f32.mrb[0].mxu0
        %v396 = vadd.f32 0.0, %v395
        %v397 = vpop.f32.mrb[0].mxu0
        %398 = vdwg.mxu0
        %399 = vst [vmem:[%s282] sm:$0xff] %v396
        %v400 = vlaneseq
        %v401 = vand.u32 %v400, 127
        %s402 = smul.u32 %s28, 128
        %v403 = vstv %s402
        %v404 = vadd.s32 %v401, %v403
        %vm405 = vcmp.lt.s32.totalorder %v404, 256
        %v406 = vsel %vm405, %v396, -inf
        %v407 = vld [vmem:[%s302] sm:$0xff]
        %408 = vset.pattern.permute.xlu0 0
        %409 = vperm.xlu0 %408, %v407
        %v410 = vpop.permute.xlu0 %409
        %vm411 = vcmp.eq.s32.totalorder %v404, %v410
        %vm412 = vmand %vm411, %vm405
        %v413 = vld [vmem:[#allocation4] sm:$0xff]
        %v414 = vsel %vm412, %v396, 0.0
        %415 = vadd.xlane.f32.xlu0 %v414
        %v416 = vpop.xlane.xlu0 %415
        %v417 = vadd.f32 %v413, %v416
        %vm418 = vcmask 7168
        %419 = vst.msk [vmem:[#allocation4] sm:$0xff] %vm418, %v417
        %v420 = vld [vmem:[#allocation2] sm:$0xff]
        %421 = vmax.xlane.f32.xlu0 %v406
        %v422 = vpop.xlane.xlu0 %421
        %v423 = vmax.f32 %v420, %v422
        %v424 = vsub.f32 %v420, %v423
        %v425 = vmul.f32 %v424, 1.442695
        %v426 = vpow.pop %v425
        %v427 = vld [vmem:[#allocation3] sm:$0xff]
        %v428 = vmul.f32 %v426, %v427
        %430 = vset.pattern.permute.xlu0 0
        %431 = vperm.xlu0 %430, %v423
        %v432 = vpop.permute.xlu0 %431
        %v434 = vsub.f32 %v406, %v432
        %v435 = vmul.f32 %v434, 1.442695
        %v436 = vpow.pop %v435
        %437 = vadd.xlane.f32.xlu0 %v436
        %v438 = vpop.xlane.xlu0 %437
        %v439 = vadd.f32 %v428, %v438
        %440 = vst.msk [vmem:[#allocation3] sm:$0xff] %vm418, %v439
        %441 = vst.msk [vmem:[#allocation2] sm:$0xff] %vm418, %v423
        %p442 = scmp.eq.s32.totalorder %s28, 1
        // Predicated region
        $region41: #{tpu_custom_call.1} parent=31 // pred_check
          %p443 = pneg %p442
        $region42: #{tpu_custom_call.1} parent=31 // pred_check_branch
          %445 = sbr.rel (%p443) target = $region44
        $region43: #{tpu_custom_call.1} parent=31 // pred_region
          %v446 = vld [vmem:[#allocation2] sm:$0xff]
          %v447 = vld [vmem:[#allocation3] sm:$0xff]
          %v448 = vlog2.pop %v447
          %v449 = vmul.f32 %v448, 0.6931472
          %v450 = vadd.f32 %v446, %v449
          %v451 = vld [vmem:[#allocation4] sm:$0xff]
          %v452 = vsub.f32 %v451, %v450
          %vm453 = vcmp.ge.s32.totalorder %v407, 0
          %vm454 = vcmp.lt.s32.totalorder %v407, 16
          %vm455 = vmand %vm453, %vm454
          %v456 = vsel %vm455, 1, 0
          %v457 = vcvt.s32.f32 %v456
          %v458 = vsub.f32 0.0, %v457
          %v459 = vmul.f32 %v458, %v452
          %460 = vst.msk [vmem:[%s306] sm:$0xff] %vm418, %v459
          %461 = vst.msk [vmem:[%s310] sm:$0xff] %vm418, %v457
        $region44: #{tpu_custom_call.1} parent=31 // pred_fallthru
          _
        %s462 = sand.u32 %s123, 1
        %s463 = scalar_lea.sflag [#allocation7], %s462
        %s464 = sand.u32 %s123, 1
        %s465 = smul.addr %s464, 8
        %s466 = scalar_lea.vmem [#allocation8], %s465
        %p467 = scmp.lt.s32.totalorder %s27, 1
        %s468 = scalar_select %p467, %s27, 1
        %s469 = smul.addr %s468, 8
        %s470 = scalar_lea.vmem %s4, %s469
        %p471 = scmp.lt.s32.totalorder %s27, 1
        %s472 = scalar_select %p471, %s27, 1
        %s473 = smul.addr %s472, 8
        %s474 = scalar_lea.vmem %s5, %s473
        // Predicated region
        $region45: #{tpu_custom_call.1} parent=31 // pred_check
          %p475 = pneg %p133
        $region46: #{tpu_custom_call.1} parent=31 // pred_check_branch
          %477 = sbr.rel (%p475) target = $region48
        $region47: #{tpu_custom_call.1} parent=31 // pred_region
          %s479 = ssub.s32 128, 128
          %480 = vsyncadd %s463, %s479
          %s481 = smul.addr %s27, 2
          %s482 = sadd.s32 %s28, %s481
          %s483 = smul.addr %s482, 128
          %s484 = scalar_lea.hbm %s3, %s483
          %s486 = sshll.u32 %s466, 4
          %s487 = int_to_ptr.vmem [resolvable:$true] %s486
          %489 = dma.vmem_to_hbm [thread:$0]  %s487, 128, %s484, %s463
        $region48: #{tpu_custom_call.1} parent=31 // pred_fallthru
          _
        // Predicated region
        $region49: #{tpu_custom_call.1} parent=31 // pred_check
          %p490 = pneg %p159
        $region50: #{tpu_custom_call.1} parent=31 // pred_check_branch
          %492 = sbr.rel (%p490) target = $region52
        $region51: #{tpu_custom_call.1} parent=31 // pred_region
          _
        $region52: #{tpu_custom_call.1} parent=31 // pred_fallthru
          _
        // Predicated region
        $region53: #{tpu_custom_call.1} parent=31 // pred_check
          %p493 = pneg %p185
        $region54: #{tpu_custom_call.1} parent=31 // pred_check_branch
          %495 = sbr.rel (%p493) target = $region56
        $region55: #{tpu_custom_call.1} parent=31 // pred_region
          _
        $region56: #{tpu_custom_call.1} parent=31 // pred_fallthru
          _
      $region32: #{tpu_custom_call.1} parent=5 // pred_fallthru
        _
      %p496 = scmp.le.s32.totalorder 2, %s18
      // Predicated region
      $region57: #{tpu_custom_call.1} parent=5 // pred_check
        %p497 = pneg %p496
      $region58: #{tpu_custom_call.1} parent=5 // pred_check_branch
        %499 = sbr.rel (%p497) target = $region60
      $region59: #{tpu_custom_call.1} parent=5 // pred_region
        %s500 = ssub.s32 %s18, 2
        // Predicated region
        $region61: #{tpu_custom_call.1} parent=59 // pred_check
          %p501 = pneg %p139
        $region62: #{tpu_custom_call.1} parent=59 // pred_check_branch
          %503 = sbr.rel (%p501) target = $region64
        $region63: #{tpu_custom_call.1} parent=59 // pred_region
          %s504 = sand.u32 %s124, 1
          %s505 = scalar_lea.sflag [#allocation7], %s504
          %s506 = sand.u32 %s124, 1
          %s507 = smul.addr %s506, 8
          %s508 = scalar_lea.vmem [#allocation8], %s507
          %509 = dma.done %s505, 128
        $region64: #{tpu_custom_call.1} parent=59 // pred_fallthru
          _
        // Predicated region
        $region65: #{tpu_custom_call.1} parent=59 // pred_check
          %p510 = pneg %p165
        $region66: #{tpu_custom_call.1} parent=59 // pred_check_branch
          %512 = sbr.rel (%p510) target = $region68
        $region67: #{tpu_custom_call.1} parent=59 // pred_region
          %p513 = scmp.lt.s32.totalorder %s29, 1
          %s514 = scalar_select %p513, %s29, 1
          %s515 = smul.addr %s514, 8
          %s516 = scalar_lea.vmem %s4, %s515
        $region68: #{tpu_custom_call.1} parent=59 // pred_fallthru
          _
        // Predicated region
        $region69: #{tpu_custom_call.1} parent=59 // pred_check
          %p517 = pneg %p191
        $region70: #{tpu_custom_call.1} parent=59 // pred_check_branch
          %519 = sbr.rel (%p517) target = $region72
        $region71: #{tpu_custom_call.1} parent=59 // pred_region
          %p520 = scmp.lt.s32.totalorder %s29, 1
          %s521 = scalar_select %p520, %s29, 1
          %s522 = smul.addr %s521, 8
          %s523 = scalar_lea.vmem %s5, %s522
        $region72: #{tpu_custom_call.1} parent=59 // pred_fallthru
          _
      $region60: #{tpu_custom_call.1} parent=5 // pred_fallthru
        _
    $region6: #{tpu_custom_call.1} parent=1 // loop_footer
      %s22 = sadd.s32 1, %s18
    $region7: #{tpu_custom_call.1} parent=1 // loop_footer_branch
      %17 = sbr.rel target = $region3
    $region8: #{tpu_custom_call.1} parent=1 // loop_exit
      _
    %524 = vsyncpa [#allocation6], 1
    %s525 = scalar_lea.sflag [#allocation6], 1
    %526 = vsyncpa %s525, 1
    %527 = vsyncpa [#allocation7], 1
    %s528 = scalar_lea.sflag [#allocation7], 1
    %529 = vsyncpa %s528, 1

</llo_original>
